<compile_context>
chip_gen: v7x
topology: tpu7x:2x2x1
jax: 0.10.0
libtpu: 0.0.40
codegen_flags: <defaults>
</compile_context>

<pallas_src>
import functools

import jax
import jax.numpy as jnp
from jax import lax
from jax.experimental import pallas as pl
from jax.experimental.pallas import tpu as pltpu


def _round_up(x, m):
    return (x + m - 1) // m * m


def _ot_block_kernel(s_i_ref, t_i_ref, ci_ref, s_j_ref, t_j_ref, cj_ref,
                     out_ref, acc_ref, *, n_valid, tm, tn, needs_mask):
    """One (TM, TN) block of (Cs - Ct); accumulate ||.||_F^2 per i-row."""
    i = pl.program_id(0)
    j = pl.program_id(1)

    @pl.when(j == 0)
    def _():
        acc_ref[...] = jnp.zeros_like(acc_ref)

    s_i = s_i_ref[...].astype(jnp.float32)          # (TM, D)
    t_i = t_i_ref[...].astype(jnp.float32)          # (TM, D)
    s_j = s_j_ref[...].astype(jnp.float32)          # (TN, D)
    t_j = t_j_ref[...].astype(jnp.float32)          # (TN, D)

    # H[a,b] = <s_a, s_b> - <t_a, t_b>  : two full-depth MXU matmuls (A @ B^T).
    dn = (((1,), (1,)), ((), ()))
    h = (lax.dot_general(s_i, s_j, dn, preferred_element_type=jnp.float32)
         - lax.dot_general(t_i, t_j, dn, preferred_element_type=jnp.float32))

    # diff[a,b] = Cs[a,b] - Ct[a,b] = c_a + c_b - 2*H[a,b]   (VPU broadcast add)
    diff = ci_ref[...] + cj_ref[...] - 2.0 * h      # (TM, TN)

    if needs_mask:  # static: only traced when N was padded up to the tile grid
        row_ok = (i * tm + lax.broadcasted_iota(jnp.int32, (tm, 1), 0)) < n_valid
        col_ok = (j * tn + lax.broadcasted_iota(jnp.int32, (1, tn), 1)) < n_valid
        diff = jnp.where(jnp.logical_and(row_ok, col_ok), diff, 0.0)

    acc_ref[...] += diff * diff

    @pl.when(j == pl.num_programs(1) - 1)
    def _():
        total = jnp.sum(acc_ref[...])               # XLU reduce, once per i-row
        out_ref[...] = jnp.broadcast_to(total, (1, 8, 128))


def ot_forward(source, target, *, block=256):
    """loss = ||Cs.sum(2) - Ct.sum(2)||_F / N^2 , matching OT.forward."""
    assert source.shape == target.shape and source.ndim == 2
    n, d = source.shape

    src = source.astype(jnp.float32)
    tgt = target.astype(jnp.float32)

    # Tile size: multiple of 8 sublanes; if more than one block along an axis,
    # the tile is `block` (must be a multiple of 128 for the (1, TN) row block).
    assert block % 128 == 0, "block must be a multiple of 128"
    tm = tn = min(block, _round_up(n, 8))
    n_pad = _round_up(n, tm)
    needs_mask = n_pad != n
    if needs_mask:
        pad = n_pad - n
        src = jnp.pad(src, ((0, pad), (0, 0)))
        tgt = jnp.pad(tgt, ((0, pad), (0, 0)))

    # O(N*D) prepass: per-row squared-norm difference, fed to the kernel both as
    # a column (N,1) and as a row (1,N) so no in-kernel transpose is needed.
    c = jnp.sum(src * src - tgt * tgt, axis=1)
    c_col = c.reshape(n_pad, 1)
    c_row = c.reshape(1, n_pad)

    num_i = n_pad // tm
    num_j = n_pad // tn

    kernel = functools.partial(_ot_block_kernel, n_valid=n, tm=tm, tn=tn,
                               needs_mask=needs_mask)

    partials = pl.pallas_call(
        kernel,
        out_shape=jax.ShapeDtypeStruct((num_i, 8, 128), jnp.float32),
        grid_spec=pltpu.PrefetchScalarGridSpec(
            num_scalar_prefetch=0,
            grid=(num_i, num_j),
            in_specs=[
                pl.BlockSpec((tm, d), lambda i, j: (i, 0)),   # s_i
                pl.BlockSpec((tm, d), lambda i, j: (i, 0)),   # t_i
                pl.BlockSpec((tm, 1), lambda i, j: (i, 0)),   # c_i (column)
                pl.BlockSpec((tn, d), lambda i, j: (j, 0)),   # s_j
                pl.BlockSpec((tn, d), lambda i, j: (j, 0)),   # t_j
                pl.BlockSpec((1, tn), lambda i, j: (0, j)),   # c_j (row)
            ],
            out_specs=pl.BlockSpec((1, 8, 128), lambda i, j: (i, 0, 0)),
            scratch_shapes=[pltpu.VMEM((tm, tn), jnp.float32)],
        ),
        compiler_params=pltpu.CompilerParams(
            dimension_semantics=("parallel", "arbitrary"),
        ),
    )(src, tgt, c_col, src, tgt, c_row)

    total = jnp.sum(partials[:, 0, 0])
    return jnp.sqrt(total) / (n * n)


def _ot_reference(source, target):
    """Pure-JAX mirror of the PyTorch forward."""
    cs = jnp.sum((source[:, None, :] - source[None, :, :]) ** 2, axis=2)
    ct = jnp.sum((target[:, None, :] - target[None, :, :]) ** 2, axis=2)
    n = source.shape[0]
    return jnp.sqrt(jnp.sum((cs - ct) ** 2)) / (n * n)


if __name__ == "__main__":
    key = jax.random.PRNGKey(0)

    cases = [
        # (N, D, block) -- tiny single-block, exact multi-block grid, padded+masked grid
        (8, 128, 256),
        (256, 128, 128),
        (200, 64, 128),
    ]

    ok = True
    for idx, (N, D, blk) in enumerate(cases):
        key, k1, k2 = jax.random.split(key, 3)
        source = jax.random.normal(k1, (N, D), dtype=jnp.float32)
        target = jax.random.normal(k2, (N, D), dtype=jnp.float32)

        loss = ot_forward(source, target, block=blk)
        jax.block_until_ready(loss)

        ref = _ot_reference(source, target)
        if not jnp.allclose(loss, ref, rtol=1e-3, atol=1e-6):
            ok = False
            print(f"case {idx}: mismatch kernel={loss} ref={ref}")

    assert ok
    print("KERNEL_OK")
</pallas_src>

<mosaic_0001>
module attributes {stable_mosaic.version = 11 : i64} {
  func.func @_ot_block_kernel(%arg0: i32, %arg1: i32, %arg2: memref<8x128xf32, #tpu.memory_space<vmem>>, %arg3: memref<8x128xf32, #tpu.memory_space<vmem>>, %arg4: memref<8x1xf32, #tpu.memory_space<vmem>>, %arg5: memref<8x128xf32, #tpu.memory_space<vmem>>, %arg6: memref<8x128xf32, #tpu.memory_space<vmem>>, %arg7: memref<1x8xf32, #tpu.memory_space<vmem>>, %arg8: memref<1x8x128xf32, #tpu.memory_space<vmem>>, %arg9: memref<8x8xf32, #tpu.memory_space<vmem>>) attributes {dimension_semantics = [#tpu.dimension_semantics<parallel>, #tpu.dimension_semantics<arbitrary>], iteration_bounds = array<i64: 1, 1>, scalar_prefetch = 0 : i64, scratch_operands = 1 : i64, tpu.core_type = #tpu.core_type<tc>, window_params = [{transform_indices = @transform_0, window_bounds = array<i64: 8, 128>}, {transform_indices = @transform_1, window_bounds = array<i64: 8, 128>}, {transform_indices = @transform_2, window_bounds = array<i64: 8, 1>}, {transform_indices = @transform_3, window_bounds = array<i64: 8, 128>}, {transform_indices = @transform_4, window_bounds = array<i64: 8, 128>}, {transform_indices = @transform_5, window_bounds = array<i64: 1, 8>}, {transform_indices = @transform_6, window_bounds = array<i64: 1, 8, 128>}]} {
    %c0_i32 = arith.constant 0 : i32
    %0 = arith.cmpi eq, %arg1, %c0_i32 : i32
    %1 = arith.extui %0 : i1 to i32
    %c0_i32_0 = arith.constant 0 : i32
    %2 = arith.cmpi ne, %1, %c0_i32_0 : i32
    scf.if %2 {
      %cst_20 = arith.constant 0.000000e+00 : f32
      %25 = vector.broadcast %cst_20 : f32 to vector<8x8xf32>
      %c0_21 = arith.constant 0 : index
      %c0_22 = arith.constant 0 : index
      %26 = vector.load %arg9[%c0_21, %c0_22] : memref<8x8xf32, #tpu.memory_space<vmem>>, vector<8x8xf32>
      tpu.vector_store %arg9[%c0_21, %c0_22], %25 {strides = array<i32>} : memref<8x8xf32, #tpu.memory_space<vmem>>, vector<8x8xf32>,
    } else {
    }
    %c0 = arith.constant 0 : index
    %c0_1 = arith.constant 0 : index
    %3 = vector.load %arg2[%c0, %c0_1] : memref<8x128xf32, #tpu.memory_space<vmem>>, vector<8x128xf32>
    %c0_2 = arith.constant 0 : index
    %c0_3 = arith.constant 0 : index
    %4 = vector.load %arg3[%c0_2, %c0_3] : memref<8x128xf32, #tpu.memory_space<vmem>>, vector<8x128xf32>
    %c0_4 = arith.constant 0 : index
    %c0_5 = arith.constant 0 : index
    %5 = vector.load %arg5[%c0_4, %c0_5] : memref<8x128xf32, #tpu.memory_space<vmem>>, vector<8x128xf32>
    %c0_6 = arith.constant 0 : index
    %c0_7 = arith.constant 0 : index
    %6 = vector.load %arg6[%c0_6, %c0_7] : memref<8x128xf32, #tpu.memory_space<vmem>>, vector<8x128xf32>
    %cst = arith.constant dense<0.000000e+00> : vector<8x8xf32>
    %7 = tpu.matmul %3, %5, %cst {dimension_numbers = #tpu.dot_dimension_numbers<[1], [1], [0], [0], [0, 0, 1, 0], [], []>} : vector<8x128xf32>, vector<8x128xf32>, vector<8x8xf32> -> vector<8x8xf32>
    %cst_8 = arith.constant dense<0.000000e+00> : vector<8x8xf32>
    %8 = tpu.matmul %4, %6, %cst_8 {dimension_numbers = #tpu.dot_dimension_numbers<[1], [1], [0], [0], [0, 0, 1, 0], [], []>} : vector<8x128xf32>, vector<8x128xf32>, vector<8x8xf32> -> vector<8x8xf32>
    %9 = arith.subf %7, %8 : vector<8x8xf32>
    %c0_9 = arith.constant 0 : index
    %c0_10 = arith.constant 0 : index
    %10 = vector.load %arg4[%c0_9, %c0_10] : memref<8x1xf32, #tpu.memory_space<vmem>>, vector<8x1xf32>
    %c0_11 = arith.constant 0 : index
    %c0_12 = arith.constant 0 : index
    %11 = vector.load %arg7[%c0_11, %c0_12] : memref<1x8xf32, #tpu.memory_space<vmem>>, vector<1x8xf32>
    %12 = vector.broadcast %10 : vector<8x1xf32> to vector<8x8xf32>
    %13 = vector.broadcast %11 : vector<1x8xf32> to vector<8x8xf32>
    %14 = arith.addf %12, %13 : vector<8x8xf32>
    %cst_13 = arith.constant 2.000000e+00 : f32
    %15 = vector.broadcast %cst_13 : f32 to vector<8x8xf32>
    %16 = arith.mulf %15, %9 : vector<8x8xf32>
    %17 = arith.subf %14, %16 : vector<8x8xf32>
    %c0_14 = arith.constant 0 : index
    %c0_15 = arith.constant 0 : index
    %18 = vector.load %arg9[%c0_14, %c0_15] : memref<8x8xf32, #tpu.memory_space<vmem>>, vector<8x8xf32>
    %19 = arith.mulf %17, %17 : vector<8x8xf32>
    %20 = arith.addf %18, %19 : vector<8x8xf32>
    %c0_16 = arith.constant 0 : index
    %c0_17 = arith.constant 0 : index
    %21 = vector.load %arg9[%c0_16, %c0_17] : memref<8x8xf32, #tpu.memory_space<vmem>>, vector<8x8xf32>
    tpu.vector_store %arg9[%c0_16, %c0_17], %20 {strides = array<i32>} : memref<8x8xf32, #tpu.memory_space<vmem>>, vector<8x8xf32>,
    %c0_i32_18 = arith.constant 0 : i32
    %22 = arith.cmpi eq, %arg1, %c0_i32_18 : i32
    %23 = arith.extui %22 : i1 to i32
    %c0_i32_19 = arith.constant 0 : i32
    %24 = arith.cmpi ne, %23, %c0_i32_19 : i32
    scf.if %24 {
      %c0_20 = arith.constant 0 : index
      %c0_21 = arith.constant 0 : index
      %25 = vector.load %arg9[%c0_20, %c0_21] : memref<8x8xf32, #tpu.memory_space<vmem>>, vector<8x8xf32>
      %26 = vector.shape_cast %25 : vector<8x8xf32> to vector<1x8x8xf32>
      %cst_22 = arith.constant dense<0.000000e+00> : vector<1xf32>
      %27 = vector.multi_reduction <add>, %26, %cst_22 [1, 2] : vector<1x8x8xf32> to vector<1xf32>
      %28 = vector.shape_cast %27 : vector<1xf32> to vector<1x1x1xf32>
      %29 = vector.extract %28[0, 0, 0] : f32 from vector<1x1x1xf32>
      %30 = vector.broadcast %29 : f32 to vector<1x8x128xf32>
      %c0_23 = arith.constant 0 : index
      %c0_24 = arith.constant 0 : index
      %c0_25 = arith.constant 0 : index
      %31 = vector.load %arg8[%c0_23, %c0_24, %c0_25] : memref<1x8x128xf32, #tpu.memory_space<vmem>>, vector<1x8x128xf32>
      tpu.vector_store %arg8[%c0_23, %c0_24, %c0_25], %30 {strides = array<i32>} : memref<1x8x128xf32, #tpu.memory_space<vmem>>, vector<1x8x128xf32>,
    } else {
    }
    return
  }
  func.func @transform_0(%arg0: i32, %arg1: i32) -> (i32, i32) {
    %c0_i32 = arith.constant 0 : i32
    %c0_i32_0 = arith.constant 0 : i32
    return %arg0, %c0_i32 : i32, i32
  }
  func.func @transform_1(%arg0: i32, %arg1: i32) -> (i32, i32) {
    %c0_i32 = arith.constant 0 : i32
    %c0_i32_0 = arith.constant 0 : i32
    return %arg0, %c0_i32 : i32, i32
  }
  func.func @transform_2(%arg0: i32, %arg1: i32) -> (i32, i32) {
    %c0_i32 = arith.constant 0 : i32
    %c0_i32_0 = arith.constant 0 : i32
    return %arg0, %c0_i32 : i32, i32
  }
  func.func @transform_3(%arg0: i32, %arg1: i32) -> (i32, i32) {
    %c0_i32 = arith.constant 0 : i32
    %c0_i32_0 = arith.constant 0 : i32
    return %arg1, %c0_i32 : i32, i32
  }
  func.func @transform_4(%arg0: i32, %arg1: i32) -> (i32, i32) {
    %c0_i32 = arith.constant 0 : i32
    %c0_i32_0 = arith.constant 0 : i32
    return %arg1, %c0_i32 : i32, i32
  }
  func.func @transform_5(%arg0: i32, %arg1: i32) -> (i32, i32) {
    %c0_i32 = arith.constant 0 : i32
    %c0_i32_0 = arith.constant 0 : i32
    return %c0_i32, %arg1 : i32, i32
  }
  func.func @transform_6(%arg0: i32, %arg1: i32) -> (i32, i32, i32) {
    %c0_i32 = arith.constant 0 : i32
    %c0_i32_0 = arith.constant 0 : i32
    %c0_i32_1 = arith.constant 0 : i32
    return %arg0, %c0_i32, %c0_i32_0 : i32, i32, i32
  }
}

</mosaic_0001>

<llo_original>
// kernel: tpu_custom_call.1
$region0: #{tpu_custom_call.1}
  #allocation0 [shape = 'u32[]', space=smem, size = 0x4, offset = 0x4, fixed_abs, tag = 'smem constant byte address 0x4 - core index']
  #allocation1 [shape = 'u32[144,128]{1,0:T(1,128)}', space=vmem, size = 0x12000, scoped, tag = 'internal scratch']
  #allocation2 [shape = 'f32[8,8]{1,0:T(8,128)}', space=vmem, size = 0x1000, scoped, tag = 'scratch operand']
  %s0 = inlined_call_operand.vmem [shape: f32[8,128], index: 0, kind: input, shape index: {}]
  %s1 = inlined_call_operand.hbm [shape: f32[8,128], index: 1, kind: input, shape index: {}]
  %s2 = inlined_call_operand.vmem [shape: f32[8,1], index: 2, kind: input, shape index: {}]
  %s3 = inlined_call_operand.vmem [shape: f32[8,128], index: 3, kind: input, shape index: {}]
  %s4 = inlined_call_operand.vmem [shape: f32[8,128], index: 4, kind: input, shape index: {}]
  %s5 = inlined_call_operand.vmem [shape: f32[1,8], index: 5, kind: input, shape index: {}]
  %s6 = inlined_call_operand.hbm [shape: f32[1,8,128], index: 6, kind: output, shape index: {}]
  %s7 = sld [smem:[#allocation0]]
  $region46: #{tpu_custom_call.1} parent=0
    _
  %s9 = ssub.s32 1, %s7
  %s10 = scalar_select 0, %s9, %s7
  $region1: #{tpu_custom_call.1} parent=0
    #allocation3 [shape = 'u8[4096]{0}', space=vmem, size = 0x1000, scoped, tag = 'input window, operand 1, single buffered']
    #allocation4 [shape = 's32[1]{0}', space=sflag, size = 0x4, scoped, tag = 'scoped memory for tpu_custom_call.1']
    #allocation5 [shape = 's32[1]{0}', space=sflag, size = 0x4, scoped, tag = 'scoped memory for tpu_custom_call.1']
    #allocation6 [shape = 'u8[4096]{0}', space=vmem, size = 0x1000, scoped, tag = 'output window, operand 0, single buffered']
    %11 = vsyncpa [#allocation4], 0
    %12 = vsyncpa [#allocation5], 0
    // Predicated region
    $region2: #{tpu_custom_call.1} parent=1 // pred_check
      _
    $region3: #{tpu_custom_call.1} parent=1 // pred_check_branch
      %14 = sbr.rel (0) target = $region5
    $region4: #{tpu_custom_call.1} parent=1 // pred_region
      _
    $region5: #{tpu_custom_call.1} parent=1 // pred_fallthru
      _
    // Predicated region
    $region6: #{tpu_custom_call.1} parent=1 // pred_check
      _
    $region7: #{tpu_custom_call.1} parent=1 // pred_check_branch
      %16 = sbr.rel (0) target = $region9
    $region8: #{tpu_custom_call.1} parent=1 // pred_region
      %s18 = ssub.s32 128, 128
      %19 = vsyncadd [#allocation4], %s18
      %s21 = sshll.u32 [#allocation3], 4
      %s22 = int_to_ptr.vmem [resolvable:$true] %s21
      %24 = dma.hbm_to_vmem [thread:$0]  %s1, 128, %s22, [#allocation4]
    $region9: #{tpu_custom_call.1} parent=1 // pred_fallthru
      _
    // Predicated region
    $region10: #{tpu_custom_call.1} parent=1 // pred_check
      _
    $region11: #{tpu_custom_call.1} parent=1 // pred_check_branch
      %26 = sbr.rel (0) target = $region13
    $region12: #{tpu_custom_call.1} parent=1 // pred_region
      _
    $region13: #{tpu_custom_call.1} parent=1 // pred_fallthru
      _
    // Predicated region
    $region14: #{tpu_custom_call.1} parent=1 // pred_check
      _
    $region15: #{tpu_custom_call.1} parent=1 // pred_check_branch
      %28 = sbr.rel (0) target = $region17
    $region16: #{tpu_custom_call.1} parent=1 // pred_region
      _
    $region17: #{tpu_custom_call.1} parent=1 // pred_fallthru
      _
    // Predicated region
    $region18: #{tpu_custom_call.1} parent=1 // pred_check
      _
    $region19: #{tpu_custom_call.1} parent=1 // pred_check_branch
      %30 = sbr.rel (0) target = $region21
    $region20: #{tpu_custom_call.1} parent=1 // pred_region
      _
    $region21: #{tpu_custom_call.1} parent=1 // pred_fallthru
      _
    // Predicated region
    $region22: #{tpu_custom_call.1} parent=1 // pred_check
      _
    $region23: #{tpu_custom_call.1} parent=1 // pred_check_branch
      %32 = sbr.rel (0) target = $region25
    $region24: #{tpu_custom_call.1} parent=1 // pred_region
      _
    $region25: #{tpu_custom_call.1} parent=1 // pred_fallthru
      _
    // Predicated region
    $region26: #{tpu_custom_call.1} parent=1 // pred_check
      _
    $region27: #{tpu_custom_call.1} parent=1 // pred_check_branch
      %34 = sbr.rel (0) target = $region29
    $region28: #{tpu_custom_call.1} parent=1 // pred_region
      %35 = dma.done [#allocation4], 128
    $region29: #{tpu_custom_call.1} parent=1 // pred_fallthru
      _
    %p36 = scmp.eq.s32.totalorder 0, 0
    // Predicated region
    $region30: #{tpu_custom_call.1} parent=1 // pred_check
      %p37 = pneg %p36
    $region31: #{tpu_custom_call.1} parent=1 // pred_check_branch
      %39 = sbr.rel (%p37) target = $region33
    $region32: #{tpu_custom_call.1} parent=1 // pred_region
      %vm40 = vcmask 64512
      %41 = vst.msk [vmem:[#allocation2] sm:$0xff] %vm40, 0.0
    $region33: #{tpu_custom_call.1} parent=1 // pred_fallthru
      _
    %v42 = vld [vmem:[%s0] sm:$0xff]
    %v43 = vld [vmem:[#allocation3] sm:$0xff]
    %v44 = vld [vmem:[%s3] sm:$0xff]
    %v45 = vld [vmem:[%s4] sm:$0xff]
    %46 = vmatprep.subr.mxu0 0.0
    %47 = vmatpush1.xpose.msra.mxu0 %v44
    %48 = vmatprep.subr.mxu0 0.0
    %49 = vmatpush1.xpose.msra.mxu0 0.0
    %50 = vmatprep.subr.mxu0 0.0
    %51 = vmatpush1.xpose.msra.mxu0 0.0
    %52 = vmatprep.subr.mxu0 0.0
    %53 = vmatpush1.xpose.msra.mxu0 0.0
    %54 = vmatprep.subr.mxu0 0.0
    %55 = vmatpush1.xpose.msra.mxu0 0.0
    %56 = vmatprep.subr.mxu0 0.0
    %57 = vmatpush1.xpose.msra.mxu0 0.0
    %58 = vmatprep.subr.mxu0 0.0
    %59 = vmatpush1.xpose.msra.mxu0 0.0
    %60 = vmatprep.subr.mxu0 0.0
    %61 = vmatpush1.xpose.msra.mxu0 0.0
    %62 = vmatprep.subr.mxu0 0.0
    %63 = vmatpush1.xpose.msra.mxu0 0.0
    %64 = vmatprep.subr.mxu0 0.0
    %65 = vmatpush1.xpose.msra.mxu0 0.0
    %66 = vmatprep.subr.mxu0 0.0
    %67 = vmatpush1.xpose.msra.mxu0 0.0
    %68 = vmatprep.subr.mxu0 0.0
    %69 = vmatpush1.xpose.msra.mxu0 0.0
    %70 = vmatprep.subr.mxu0 0.0
    %71 = vmatpush1.xpose.msra.mxu0 0.0
    %72 = vmatprep.subr.mxu0 0.0
    %73 = vmatpush1.xpose.msra.mxu0 0.0
    %74 = vmatprep.subr.mxu0 0.0
    %75 = vmatpush1.xpose.msra.mxu0 0.0
    %76 = vmatprep.subr.mxu0 0.0
    %77 = vmatpush1.xpose.msra.mxu0 0.0
    %78 = vmatprep.subr.mxu0 0.0
    %79 = vmatpush1.xpose.msra.mxu0 0.0
    %80 = vmatprep.subr.mxu0 0.0
    %81 = vmatpush1.xpose.msra.mxu0 0.0
    %82 = vmatprep.subr.mxu0 0.0
    %83 = vmatpush1.xpose.msra.mxu0 0.0
    %84 = vmatprep.subr.mxu0 0.0
    %85 = vmatpush1.xpose.msra.mxu0 0.0
    %86 = vmatprep.subr.mxu0 0.0
    %87 = vmatpush1.xpose.msra.mxu0 0.0
    %88 = vmatprep.subr.mxu0 0.0
    %89 = vmatpush1.xpose.msra.mxu0 0.0
    %90 = vmatprep.subr.mxu0 0.0
    %91 = vmatpush1.xpose.msra.mxu0 0.0
    %92 = vmatprep.subr.mxu0 0.0
    %93 = vmatpush1.xpose.msra.mxu0 0.0
    %94 = vmatprep.subr.mxu0 0.0
    %95 = vmatpush1.xpose.msra.mxu0 0.0
    %96 = vmatprep.subr.mxu0 0.0
    %97 = vmatpush1.xpose.msra.mxu0 0.0
    %98 = vmatprep.subr.mxu0 0.0
    %99 = vmatpush1.xpose.msra.mxu0 0.0
    %100 = vmatprep.subr.mxu0 0.0
    %101 = vmatpush1.xpose.msra.mxu0 0.0
    %102 = vmatprep.subr.mxu0 0.0
    %103 = vmatpush1.xpose.msra.mxu0 0.0
    %104 = vmatprep.subr.mxu0 0.0
    %105 = vmatpush1.xpose.msra.mxu0 0.0
    %106 = vmatprep.subr.mxu0 0.0
    %107 = vmatpush1.xpose.msra.mxu0 0.0
    %108 = vmatprep.subr.mxu0 0.0
    %109 = vmatpush1.xpose.msra.mxu0 0.0
    %110 = vmatprep.mubr.f32.mxu0 0.0
    %111 = vmatmul.mubr.f32.gmra.mrb[0].mxu0 %v42
    %v112 = vpop.f32.mrb[0].mxu0
    %v113 = vadd.f32 0.0, %v112
    %v114 = vpop.f32.mrb[0].mxu0
    %115 = vdwg.mxu0
    %116 = vmatprep.subr.mxu0 0.0
    %117 = vmatpush1.xpose.msra.mxu0 %v45
    %118 = vmatprep.subr.mxu0 0.0
    %119 = vmatpush1.xpose.msra.mxu0 0.0
    %120 = vmatprep.subr.mxu0 0.0
    %121 = vmatpush1.xpose.msra.mxu0 0.0
    %122 = vmatprep.subr.mxu0 0.0
    %123 = vmatpush1.xpose.msra.mxu0 0.0
    %124 = vmatprep.subr.mxu0 0.0
    %125 = vmatpush1.xpose.msra.mxu0 0.0
    %126 = vmatprep.subr.mxu0 0.0
    %127 = vmatpush1.xpose.msra.mxu0 0.0
    %128 = vmatprep.subr.mxu0 0.0
    %129 = vmatpush1.xpose.msra.mxu0 0.0
    %130 = vmatprep.subr.mxu0 0.0
    %131 = vmatpush1.xpose.msra.mxu0 0.0
    %132 = vmatprep.subr.mxu0 0.0
    %133 = vmatpush1.xpose.msra.mxu0 0.0
    %134 = vmatprep.subr.mxu0 0.0
    %135 = vmatpush1.xpose.msra.mxu0 0.0
    %136 = vmatprep.subr.mxu0 0.0
    %137 = vmatpush1.xpose.msra.mxu0 0.0
    %138 = vmatprep.subr.mxu0 0.0
    %139 = vmatpush1.xpose.msra.mxu0 0.0
    %140 = vmatprep.subr.mxu0 0.0
    %141 = vmatpush1.xpose.msra.mxu0 0.0
    %142 = vmatprep.subr.mxu0 0.0
    %143 = vmatpush1.xpose.msra.mxu0 0.0
    %144 = vmatprep.subr.mxu0 0.0
    %145 = vmatpush1.xpose.msra.mxu0 0.0
    %146 = vmatprep.subr.mxu0 0.0
    %147 = vmatpush1.xpose.msra.mxu0 0.0
    %148 = vmatprep.subr.mxu0 0.0
    %149 = vmatpush1.xpose.msra.mxu0 0.0
    %150 = vmatprep.subr.mxu0 0.0
    %151 = vmatpush1.xpose.msra.mxu0 0.0
    %152 = vmatprep.subr.mxu0 0.0
    %153 = vmatpush1.xpose.msra.mxu0 0.0
    %154 = vmatprep.subr.mxu0 0.0
    %155 = vmatpush1.xpose.msra.mxu0 0.0
    %156 = vmatprep.subr.mxu0 0.0
    %157 = vmatpush1.xpose.msra.mxu0 0.0
    %158 = vmatprep.subr.mxu0 0.0
    %159 = vmatpush1.xpose.msra.mxu0 0.0
    %160 = vmatprep.subr.mxu0 0.0
    %161 = vmatpush1.xpose.msra.mxu0 0.0
    %162 = vmatprep.subr.mxu0 0.0
    %163 = vmatpush1.xpose.msra.mxu0 0.0
    %164 = vmatprep.subr.mxu0 0.0
    %165 = vmatpush1.xpose.msra.mxu0 0.0
    %166 = vmatprep.subr.mxu0 0.0
    %167 = vmatpush1.xpose.msra.mxu0 0.0
    %168 = vmatprep.subr.mxu0 0.0
    %169 = vmatpush1.xpose.msra.mxu0 0.0
    %170 = vmatprep.subr.mxu0 0.0
    %171 = vmatpush1.xpose.msra.mxu0 0.0
    %172 = vmatprep.subr.mxu0 0.0
    %173 = vmatpush1.xpose.msra.mxu0 0.0
    %174 = vmatprep.subr.mxu0 0.0
    %175 = vmatpush1.xpose.msra.mxu0 0.0
    %176 = vmatprep.subr.mxu0 0.0
    %177 = vmatpush1.xpose.msra.mxu0 0.0
    %178 = vmatprep.subr.mxu0 0.0
    %179 = vmatpush1.xpose.msra.mxu0 0.0
    %180 = vmatprep.mubr.f32.mxu0 0.0
    %181 = vmatmul.mubr.f32.gmra.mrb[0].mxu0 %v43
    %v182 = vpop.f32.mrb[0].mxu0
    %v183 = vadd.f32 0.0, %v182
    %v184 = vpop.f32.mrb[0].mxu0
    %185 = vdwg.mxu0
    %v186 = vsub.f32 %v113, %v183
    %v187 = vld [vmem:[%s2] sm:$0xff]
    %v188 = vld [vmem:[%s5] sm:$0x1]
    %190 = vset.pattern.permute.xlu0 0
    %191 = vperm.xlu0 %190, %v187
    %v192 = vpop.permute.xlu0 %191
    %v195 = vlaneseq
    %v196 = vshrl.u32 %v195, 7
    %v197 = vsub.s32 0, %v196
    %v198 = vrot.slane %v188, %v197
    %v200 = vadd.f32 %v192, %v198
    %v201 = vmul.f32 %v186, 2.0
    %v202 = vsub.f32 %v200, %v201
    %v203 = vld [vmem:[#allocation2] sm:$0xff]
    %v204 = vmul.f32 %v202, %v202
    %v205 = vadd.f32 %v203, %v204
    %vm206 = vcmask 64512
    %207 = vst.msk [vmem:[#allocation2] sm:$0xff] %vm206, %v205
    // Predicated region
    $region34: #{tpu_custom_call.1} parent=1 // pred_check
      %p208 = pneg %p36
    $region35: #{tpu_custom_call.1} parent=1 // pred_check_branch
      %210 = sbr.rel (%p208) target = $region37
    $region36: #{tpu_custom_call.1} parent=1 // pred_region
      %v211 = vld [vmem:[#allocation2] sm:$0xff]
      %v212 = vsel %vm206, %v211, 0.0
      %213 = vadd.xlane.f32.xlu0 %v212
      %v214 = vpop.xlane.xlu0 %213
      %v215 = vrot.slane %v214, 4
      %v216 = vadd.f32 %v214, %v215
      %v217 = vrot.slane %v216, 2
      %v218 = vadd.f32 %v216, %v217
      %v219 = vrot.slane %v218, 1
      %v220 = vadd.f32 %v218, %v219
      %s221 = vtos %v220
      %v222 = vstv %s221
      %223 = vst [vmem:[#allocation6] sm:$0xff] %v222
    $region37: #{tpu_custom_call.1} parent=1 // pred_fallthru
      _
    // Predicated region
    $region38: #{tpu_custom_call.1} parent=1 // pred_check
      _
    $region39: #{tpu_custom_call.1} parent=1 // pred_check_branch
      %225 = sbr.rel (0) target = $region41
    $region40: #{tpu_custom_call.1} parent=1 // pred_region
      %s227 = ssub.s32 128, 128
      %228 = vsyncadd [#allocation5], %s227
      %s230 = sshll.u32 [#allocation6], 4
      %s231 = int_to_ptr.vmem [resolvable:$true] %s230
      %233 = dma.vmem_to_hbm [thread:$0]  %s231, 128, %s6, [#allocation5]
    $region41: #{tpu_custom_call.1} parent=1 // pred_fallthru
      _
    // Predicated region
    $region42: #{tpu_custom_call.1} parent=1 // pred_check
      _
    $region43: #{tpu_custom_call.1} parent=1 // pred_check_branch
      %235 = sbr.rel (0) target = $region45
    $region44: #{tpu_custom_call.1} parent=1 // pred_region
      %236 = dma.done [#allocation5], 128
    $region45: #{tpu_custom_call.1} parent=1 // pred_fallthru
      _
    %237 = vsyncpa [#allocation4], 1
    %238 = vsyncpa [#allocation5], 1

</llo_original>
